<compile_context>
chip_gen: v6e
topology: v6e:2x2x1
jax: 0.10.0
libtpu: 0.0.40
codegen_flags: <defaults>
</compile_context>

<pallas_src>
import functools

import jax
import jax.numpy as jnp
from jax.experimental import pallas as pl
from jax.experimental.pallas import tpu as pltpu

MARGIN = 2.0
EPS = 1e-6  # matches torch.nn.functional.pairwise_distance default eps


def _round_up(x, m):
    return ((x + m - 1) // m) * m


def _contrastive_loss_kernel(o1_ref, o2_ref, label_ref, sel_ref, out_ref, *,
                             batch, margin, eps):
    """One grid step over a lane-packed tile.

    o1_ref/o2_ref : (TR, W)  W = R*D lanes; R original rows packed per row.
    label_ref     : (TR, R)  one label per original row.
    sel_ref       : (W, R)   0/1 block-diagonal selector; column g sums the D
                             lanes belonging to packed row-group g (resident).
    out_ref       : (TR, R)  resident accumulator of per-pair losses.
    """
    i = pl.program_id(0)
    n_i = pl.num_programs(0)

    @pl.when(i == 0)
    def _():
        out_ref[...] = jnp.zeros_like(out_ref)

    # Accept bf16 or f32 inputs; compute in f32.
    o1 = o1_ref[...].astype(jnp.float32)
    o2 = o2_ref[...].astype(jnp.float32)
    lab = label_ref[...].astype(jnp.float32)

    # F.pairwise_distance: ||x1 - x2 + eps||_2 along the feature dim.
    diff = o1 - o2 + eps                                   # full-lane VPU work
    # Per-row segment sum over each row's D lanes via one MXU matmul -> (TR, R).
    dist_sq = jnp.dot(diff * diff, sel_ref[...],
                      preferred_element_type=jnp.float32)
    dist = jnp.sqrt(dist_sq)                               # EUP slot
    hinge = jnp.maximum(margin - dist, 0.0)
    # (1-l)*d^2 + l*h^2 == d^2 + l*(h^2 - d^2)   (one fewer VPU op)
    per_pair = dist_sq + lab * (hinge * hinge - dist_sq)

    tr, r = per_pair.shape

    @pl.when(i < n_i - 1)
    def _():
        out_ref[...] += per_pair

    # Padded rows can only live in the last grid step: mask only there.
    @pl.when(i == n_i - 1)
    def _():
        row = (i * (tr * r)
               + jax.lax.broadcasted_iota(jnp.int32, (tr, r), 0) * r
               + jax.lax.broadcasted_iota(jnp.int32, (tr, r), 1))
        out_ref[...] += jnp.where(row < batch, per_pair, 0.0)


def contrastive_loss(output1, output2, label, *, margin=MARGIN, eps=EPS,
                     tile_rows=None):
    """output1, output2: (B, D) f32/bf16; label: (B,) or (B, 1). Scalar f32 loss.

    `tile_rows` (optional) = packed rows per block (each packed row holds
    R = max(1, 128 // D) original rows).
    """
    B, D = output1.shape
    label = jnp.reshape(label, (B,))

    itemsize = jnp.dtype(output1.dtype).itemsize
    R = max(1, 128 // D)          # original rows packed per lane-row
    W = R * D                     # packed lane width (128 when D divides 128)

    # Sublane granularity: 8 rows for 4-byte dtypes, 16 for bf16/f16.
    sub = max(8, 32 // itemsize)

    packed_rows = pl.cdiv(B, R)
    if tile_rows is None:
        # ~6 MiB per input block; 2 inputs x 2 pipeline buffers ~= 24 MiB VMEM.
        target_block_bytes = 6 * 1024 * 1024
        tr = max(sub, (target_block_bytes // max(1, W * itemsize)) // sub * sub)
    else:
        tr = max(sub, (int(tile_rows) // sub) * sub)
    tr = min(tr, _round_up(packed_rows, sub))

    packed_padded = _round_up(packed_rows, tr)
    nsteps = packed_padded // tr
    b_pad = packed_padded * R

    if b_pad != B:
        pad = b_pad - B
        output1 = jnp.pad(output1, ((0, pad), (0, 0)))
        output2 = jnp.pad(output2, ((0, pad), (0, 0)))
        label = jnp.pad(label, ((0, pad),))

    # Free, contiguous reshapes (no transpose -> no extra HBM traffic).
    o1p = jnp.reshape(output1, (packed_padded, W))
    o2p = jnp.reshape(output2, (packed_padded, W))
    labp = jnp.reshape(label.astype(jnp.float32), (packed_padded, R))

    # (W, R) 0/1 block-diagonal selector for the per-row segment sum.
    sel = (jnp.arange(W, dtype=jnp.int32)[:, None] // D
           == jnp.arange(R, dtype=jnp.int32)[None, :]).astype(jnp.float32)

    kernel = functools.partial(_contrastive_loss_kernel, batch=B,
                               margin=float(margin), eps=float(eps))

    per_pair_sums = pl.pallas_call(
        kernel,
        out_shape=jax.ShapeDtypeStruct((tr, R), jnp.float32),
        grid_spec=pltpu.PrefetchScalarGridSpec(
            num_scalar_prefetch=0,
            grid=(nsteps,),
            in_specs=[
                pl.BlockSpec((tr, W), lambda i: (i, 0)),
                pl.BlockSpec((tr, W), lambda i: (i, 0)),
                pl.BlockSpec((tr, R), lambda i: (i, 0)),
                pl.BlockSpec((W, R), lambda i: (0, 0)),   # resident constant
            ],
            out_specs=pl.BlockSpec((tr, R), lambda i: (0, 0)),  # resident acc
        ),
        compiler_params=pltpu.CompilerParams(
            dimension_semantics=("arbitrary",),
            vmem_limit_bytes=48 * 1024 * 1024,
        ),
    )(o1p, o2p, labp, sel)

    # Mean over the *real* batch size.
    return jnp.sum(per_pair_sums) / jnp.float32(B)


def _reference(output1, output2, label, margin=MARGIN, eps=EPS):
    diff = output1 - output2 + eps
    dist = jnp.sqrt(jnp.sum(diff * diff, axis=-1, keepdims=True))
    hinge = jnp.maximum(margin - dist, 0.0)
    return jnp.mean((1.0 - label) * dist ** 2 + label * hinge ** 2)


if __name__ == "__main__":
    key = jax.random.PRNGKey(0)
    k1, k2, k3 = jax.random.split(key, 3)

    # B not a multiple of the pack/tile -> exercises padded-row masking.
    B, D = 50, 32
    output1 = jax.random.normal(k1, (B, D), dtype=jnp.float32)
    # Keep the pairs close so both the d^2 and the hinge branch are exercised.
    output2 = output1 + 0.25 * jax.random.normal(k2, (B, D), dtype=jnp.float32)
    label = jax.random.bernoulli(k3, 0.5, (B, 1)).astype(jnp.float32)

    ref = _reference(output1, output2, label)

    # Tolerance leaves headroom for the MXU f32 segment-sum matmul
    # (bf16-pass decomposition on generations without native f32 MXU).
    RTOL = ATOL = 5e-3

    # Default (auto-picked) tile: single grid step, tail rows masked.
    loss = jax.block_until_ready(contrastive_loss(output1, output2, label))
    assert jnp.allclose(loss, ref, rtol=RTOL, atol=ATOL), (loss, ref)

    # Small explicit tile: multi-step reduction + last-step masking path.
    loss_tiled = jax.block_until_ready(
        contrastive_loss(output1, output2, label, tile_rows=8))
    assert jnp.allclose(loss_tiled, ref, rtol=RTOL, atol=ATOL), (loss_tiled, ref)

    # bf16 inputs stay bf16 in HBM; the kernel upcasts internally.
    o1_bf = output1.astype(jnp.bfloat16)
    o2_bf = output2.astype(jnp.bfloat16)
    ref_bf = _reference(o1_bf.astype(jnp.float32), o2_bf.astype(jnp.float32), label)
    loss_bf = jax.block_until_ready(contrastive_loss(o1_bf, o2_bf, label))
    assert jnp.allclose(loss_bf, ref_bf, rtol=RTOL, atol=ATOL), (loss_bf, ref_bf)

    print("KERNEL_OK")
</pallas_src>

<mosaic_0001>
module attributes {stable_mosaic.version = 11 : i64} {
  func.func @_contrastive_loss_kernel(%arg0: i32, %arg1: memref<16x128xf32, #tpu.memory_space<vmem>>, %arg2: memref<16x128xf32, #tpu.memory_space<vmem>>, %arg3: memref<16x4xf32, #tpu.memory_space<vmem>>, %arg4: memref<128x4xf32, #tpu.memory_space<vmem>>, %arg5: memref<16x4xf32, #tpu.memory_space<vmem>>) attributes {dimension_semantics = [#tpu.dimension_semantics<arbitrary>], iteration_bounds = array<i64: 1>, scalar_prefetch = 0 : i64, scratch_operands = 0 : i64, tpu.core_type = #tpu.core_type<tc>, window_params = [{transform_indices = @transform_0, window_bounds = array<i64: 16, 128>}, {transform_indices = @transform_1, window_bounds = array<i64: 16, 128>}, {transform_indices = @transform_2, window_bounds = array<i64: 16, 4>}, {pipeline_mode = #tpu.pipeline_mode<synchronous>, transform_indices = @transform_3, window_bounds = array<i64: 128, 4>}, {pipeline_mode = #tpu.pipeline_mode<synchronous>, transform_indices = @transform_4, window_bounds = array<i64: 16, 4>}]} {
    %c0_i32 = arith.constant 0 : i32
    %0 = arith.cmpi eq, %arg0, %c0_i32 : i32
    %1 = arith.extui %0 : i1 to i32
    %c0_i32_0 = arith.constant 0 : i32
    %2 = arith.cmpi ne, %1, %c0_i32_0 : i32
    scf.if %2 {
      %cst_15 = arith.constant 0.000000e+00 : f32
      %27 = vector.broadcast %cst_15 : f32 to vector<16x4xf32>
      %c0_16 = arith.constant 0 : index
      %c0_17 = arith.constant 0 : index
      %28 = vector.load %arg5[%c0_16, %c0_17] : memref<16x4xf32, #tpu.memory_space<vmem>>, vector<16x4xf32>
      tpu.vector_store %arg5[%c0_16, %c0_17], %27 {strides = array<i32>} : memref<16x4xf32, #tpu.memory_space<vmem>>, vector<16x4xf32>,
    } else {
    }
    %c0 = arith.constant 0 : index
    %c0_1 = arith.constant 0 : index
    %3 = vector.load %arg1[%c0, %c0_1] : memref<16x128xf32, #tpu.memory_space<vmem>>, vector<16x128xf32>
    %c0_2 = arith.constant 0 : index
    %c0_3 = arith.constant 0 : index
    %4 = vector.load %arg2[%c0_2, %c0_3] : memref<16x128xf32, #tpu.memory_space<vmem>>, vector<16x128xf32>
    %c0_4 = arith.constant 0 : index
    %c0_5 = arith.constant 0 : index
    %5 = vector.load %arg3[%c0_4, %c0_5] : memref<16x4xf32, #tpu.memory_space<vmem>>, vector<16x4xf32>
    %6 = arith.subf %3, %4 : vector<16x128xf32>
    %cst = arith.constant 9.99999997E-7 : f32
    %7 = vector.broadcast %cst : f32 to vector<16x128xf32>
    %8 = arith.addf %6, %7 : vector<16x128xf32>
    %9 = arith.mulf %8, %8 : vector<16x128xf32>
    %c0_6 = arith.constant 0 : index
    %c0_7 = arith.constant 0 : index
    %10 = vector.load %arg4[%c0_6, %c0_7] : memref<128x4xf32, #tpu.memory_space<vmem>>, vector<128x4xf32>
    %cst_8 = arith.constant dense<0.000000e+00> : vector<16x4xf32>
    %11 = tpu.matmul %9, %10, %cst_8 {dimension_numbers = #tpu.dot_dimension_numbers<[1], [0], [0], [1], [0, 0, 1, 1], [], []>} : vector<16x128xf32>, vector<128x4xf32>, vector<16x4xf32> -> vector<16x4xf32>
    %12 = math.sqrt %11 : vector<16x4xf32>
    %cst_9 = arith.constant 2.000000e+00 : f32
    %13 = vector.broadcast %cst_9 : f32 to vector<16x4xf32>
    %14 = arith.subf %13, %12 : vector<16x4xf32>
    %cst_10 = arith.constant 0.000000e+00 : f32
    %15 = vector.broadcast %cst_10 : f32 to vector<16x4xf32>
    %16 = arith.maximumf %14, %15 : vector<16x4xf32>
    %17 = arith.mulf %16, %16 : vector<16x4xf32>
    %18 = arith.subf %17, %11 : vector<16x4xf32>
    %19 = arith.mulf %5, %18 : vector<16x4xf32>
    %20 = arith.addf %11, %19 : vector<16x4xf32>
    %c0_i32_11 = arith.constant 0 : i32
    %21 = arith.cmpi slt, %arg0, %c0_i32_11 : i32
    %22 = arith.extui %21 : i1 to i32
    %c0_i32_12 = arith.constant 0 : i32
    %23 = arith.cmpi ne, %22, %c0_i32_12 : i32
    scf.if %23 {
      %c0_15 = arith.constant 0 : index
      %c0_16 = arith.constant 0 : index
      %27 = vector.load %arg5[%c0_15, %c0_16] : memref<16x4xf32, #tpu.memory_space<vmem>>, vector<16x4xf32>
      %28 = arith.addf %27, %20 : vector<16x4xf32>
      %c0_17 = arith.constant 0 : index
      %c0_18 = arith.constant 0 : index
      %29 = vector.load %arg5[%c0_17, %c0_18] : memref<16x4xf32, #tpu.memory_space<vmem>>, vector<16x4xf32>
      tpu.vector_store %arg5[%c0_17, %c0_18], %28 {strides = array<i32>} : memref<16x4xf32, #tpu.memory_space<vmem>>, vector<16x4xf32>,
    } else {
    }
    %c0_i32_13 = arith.constant 0 : i32
    %24 = arith.cmpi eq, %arg0, %c0_i32_13 : i32
    %25 = arith.extui %24 : i1 to i32
    %c0_i32_14 = arith.constant 0 : i32
    %26 = arith.cmpi ne, %25, %c0_i32_14 : i32
    scf.if %26 {
      %c64_i32 = arith.constant 64 : i32
      %27 = arith.muli %arg0, %c64_i32 : i32
      %28 = tpu.iota {dimensions = array<i32: 0>} : vector<16x4xi32>
      %c4_i32 = arith.constant 4 : i32
      %29 = vector.broadcast %c4_i32 : i32 to vector<16x4xi32>
      %30 = arith.muli %28, %29 : vector<16x4xi32>
      %31 = vector.broadcast %27 : i32 to vector<16x4xi32>
      %32 = arith.addi %31, %30 : vector<16x4xi32>
      %33 = tpu.iota {dimensions = array<i32: 1>} : vector<16x4xi32>
      %34 = arith.addi %32, %33 : vector<16x4xi32>
      %c0_15 = arith.constant 0 : index
      %c0_16 = arith.constant 0 : index
      %35 = vector.load %arg5[%c0_15, %c0_16] : memref<16x4xf32, #tpu.memory_space<vmem>>, vector<16x4xf32>
      %c50_i32 = arith.constant 50 : i32
      %36 = vector.broadcast %c50_i32 : i32 to vector<16x4xi32>
      %37 = arith.cmpi slt, %34, %36 : vector<16x4xi32>
      %cst_17 = arith.constant 0.000000e+00 : f32
      %38 = vector.broadcast %cst_17 : f32 to vector<16x4xf32>
      %39 = arith.select %37, %20, %38 : vector<16x4xi1>, vector<16x4xf32>
      %40 = arith.addf %35, %39 : vector<16x4xf32>
      %c0_18 = arith.constant 0 : index
      %c0_19 = arith.constant 0 : index
      %41 = vector.load %arg5[%c0_18, %c0_19] : memref<16x4xf32, #tpu.memory_space<vmem>>, vector<16x4xf32>
      tpu.vector_store %arg5[%c0_18, %c0_19], %40 {strides = array<i32>} : memref<16x4xf32, #tpu.memory_space<vmem>>, vector<16x4xf32>,
    } else {
    }
    return
  }
  func.func @transform_0(%arg0: i32) -> (i32, i32) {
    %c0_i32 = arith.constant 0 : i32
    %c0_i32_0 = arith.constant 0 : i32
    return %arg0, %c0_i32 : i32, i32
  }
  func.func @transform_1(%arg0: i32) -> (i32, i32) {
    %c0_i32 = arith.constant 0 : i32
    %c0_i32_0 = arith.constant 0 : i32
    return %arg0, %c0_i32 : i32, i32
  }
  func.func @transform_2(%arg0: i32) -> (i32, i32) {
    %c0_i32 = arith.constant 0 : i32
    %c0_i32_0 = arith.constant 0 : i32
    return %arg0, %c0_i32 : i32, i32
  }
  func.func @transform_3(%arg0: i32) -> (i32, i32) {
    %c0_i32 = arith.constant 0 : i32
    %c0_i32_0 = arith.constant 0 : i32
    %c0_i32_1 = arith.constant 0 : i32
    return %c0_i32, %c0_i32_0 : i32, i32
  }
  func.func @transform_4(%arg0: i32) -> (i32, i32) {
    %c0_i32 = arith.constant 0 : i32
    %c0_i32_0 = arith.constant 0 : i32
    %c0_i32_1 = arith.constant 0 : i32
    return %c0_i32, %c0_i32_0 : i32, i32
  }
}

</mosaic_0001>

<llo_original>
// kernel: tpu_custom_call.1
$region0: #{tpu_custom_call.1}
  #allocation0 [shape = 'u32[]', space=smem, size = 0x4, offset = 0x4, fixed_abs, tag = 'smem constant byte address 0x4 - core index']
  #allocation1 [shape = 'u32[144,128]{1,0:T(1,128)}', space=vmem, size = 0x12000, scoped, tag = 'internal scratch']
  %s0 = inlined_call_operand.vmem [shape: f32[16,128], index: 0, kind: input, shape index: {}]
  %s1 = inlined_call_operand.vmem [shape: f32[16,128], index: 1, kind: input, shape index: {}]
  %s2 = inlined_call_operand.vmem [shape: f32[16,4], index: 2, kind: input, shape index: {}]
  %s3 = inlined_call_operand.vmem [shape: f32[128,4], index: 3, kind: input, shape index: {}]
  %s4 = inlined_call_operand.vmem [shape: f32[16,4], index: 4, kind: output, shape index: {}]
  %s5 = sld [smem:[#allocation0]]
  $region38: #{tpu_custom_call.1} parent=0
    _
  %s7 = ssub.s32 1, %s5
  %s8 = scalar_select 0, %s7, %s5
  // Predicated region
  $region2: #{tpu_custom_call.1} parent=0 // pred_check
    _
  $region3: #{tpu_custom_call.1} parent=0 // pred_check_branch
    %10 = sbr.rel (0) target = $region5
  $region4: #{tpu_custom_call.1} parent=0 // pred_region
    _
  $region5: #{tpu_custom_call.1} parent=0 // pred_fallthru
    _
  // Predicated region
  $region6: #{tpu_custom_call.1} parent=0 // pred_check
    _
  $region7: #{tpu_custom_call.1} parent=0 // pred_check_branch
    %12 = sbr.rel (0) target = $region9
  $region8: #{tpu_custom_call.1} parent=0 // pred_region
    _
  $region9: #{tpu_custom_call.1} parent=0 // pred_fallthru
    _
  // Predicated region
  $region10: #{tpu_custom_call.1} parent=0 // pred_check
    _
  $region11: #{tpu_custom_call.1} parent=0 // pred_check_branch
    %14 = sbr.rel (0) target = $region13
  $region12: #{tpu_custom_call.1} parent=0 // pred_region
    _
  $region13: #{tpu_custom_call.1} parent=0 // pred_fallthru
    _
  // Predicated region
  $region14: #{tpu_custom_call.1} parent=0 // pred_check
    _
  $region15: #{tpu_custom_call.1} parent=0 // pred_check_branch
    %16 = sbr.rel (0) target = $region17
  $region16: #{tpu_custom_call.1} parent=0 // pred_region
    _
  $region17: #{tpu_custom_call.1} parent=0 // pred_fallthru
    _
  %p17 = scmp.eq.s32.totalorder 0, 0
  // Predicated region
  $region18: #{tpu_custom_call.1} parent=0 // pred_check
    %p18 = pneg %p17
  $region19: #{tpu_custom_call.1} parent=0 // pred_check_branch
    %20 = sbr.rel (%p18) target = $region21
  $region20: #{tpu_custom_call.1} parent=0 // pred_region
    %vm21 = vcmask 31744
    %22 = vst.msk [vmem:[%s4] sm:$0xff] %vm21, 0.0
    %23 = vst.msk [vmem:[%s4 + $0x8] sm:$0xff] %vm21, 0.0
  $region21: #{tpu_custom_call.1} parent=0 // pred_fallthru
    _
  %v24 = vld [vmem:[%s0] sm:$0xff]
  %v25 = vld [vmem:[%s0 + $0x8] sm:$0xff]
  %v26 = vld [vmem:[%s1] sm:$0xff]
  %v27 = vld [vmem:[%s1 + $0x8] sm:$0xff]
  %v28 = vld [vmem:[%s2] sm:$0xff]
  %v29 = vld [vmem:[%s2 + $0x8] sm:$0xff]
  %v30 = vsub.f32 %v24, %v26
  %v31 = vsub.f32 %v25, %v27
  %v32 = vadd.f32 %v30, 1e-06
  %v33 = vadd.f32 %v31, 1e-06
  %v34 = vmul.f32 %v32, %v32
  %v35 = vmul.f32 %v33, %v33
  %v36 = vld [vmem:[%s3] sm:$0xff]
  %v37 = vld [vmem:[%s3 + $0x8] sm:$0xff]
  %v38 = vld [vmem:[%s3 + $0x10] sm:$0xff]
  %v39 = vld [vmem:[%s3 + $0x18] sm:$0xff]
  %v40 = vld [vmem:[%s3 + $0x20] sm:$0xff]
  %v41 = vld [vmem:[%s3 + $0x28] sm:$0xff]
  %v42 = vld [vmem:[%s3 + $0x30] sm:$0xff]
  %v43 = vld [vmem:[%s3 + $0x38] sm:$0xff]
  %v44 = vld [vmem:[%s3 + $0x40] sm:$0xff]
  %v45 = vld [vmem:[%s3 + $0x48] sm:$0xff]
  %v46 = vld [vmem:[%s3 + $0x50] sm:$0xff]
  %v47 = vld [vmem:[%s3 + $0x58] sm:$0xff]
  %v48 = vld [vmem:[%s3 + $0x60] sm:$0xff]
  %v49 = vld [vmem:[%s3 + $0x68] sm:$0xff]
  %v50 = vld [vmem:[%s3 + $0x70] sm:$0xff]
  %v51 = vld [vmem:[%s3 + $0x78] sm:$0xff]
  %52 = vmatprep.subr.mxu0 0.0
  %53 = vmatpush1.msra.mxu0 %v51
  %54 = vmatprep.subr.mxu0 0.0
  %55 = vmatpush1.msra.mxu0 %v50
  %56 = vmatprep.subr.mxu0 0.0
  %57 = vmatpush1.msra.mxu0 %v49
  %58 = vmatprep.subr.mxu0 0.0
  %59 = vmatpush1.msra.mxu0 %v48
  %60 = vmatprep.subr.mxu0 0.0
  %61 = vmatpush1.msra.mxu0 %v47
  %62 = vmatprep.subr.mxu0 0.0
  %63 = vmatpush1.msra.mxu0 %v46
  %64 = vmatprep.subr.mxu0 0.0
  %65 = vmatpush1.msra.mxu0 %v45
  %66 = vmatprep.subr.mxu0 0.0
  %67 = vmatpush1.msra.mxu0 %v44
  %68 = vmatprep.subr.mxu0 0.0
  %69 = vmatpush1.msra.mxu0 %v43
  %70 = vmatprep.subr.mxu0 0.0
  %71 = vmatpush1.msra.mxu0 %v42
  %72 = vmatprep.subr.mxu0 0.0
  %73 = vmatpush1.msra.mxu0 %v41
  %74 = vmatprep.subr.mxu0 0.0
  %75 = vmatpush1.msra.mxu0 %v40
  %76 = vmatprep.subr.mxu0 0.0
  %77 = vmatpush1.msra.mxu0 %v39
  %78 = vmatprep.subr.mxu0 0.0
  %79 = vmatpush1.msra.mxu0 %v38
  %80 = vmatprep.subr.mxu0 0.0
  %81 = vmatpush1.msra.mxu0 %v37
  %82 = vmatprep.subr.mxu0 0.0
  %83 = vmatpush1.msra.mxu0 %v36
  %84 = vmatprep.subr.mxu0 0.0
  %85 = vmatpush2.msra.mxu0 0.0
  %86 = vmatprep.subr.mxu0 0.0
  %87 = vmatpush2.msra.mxu0 0.0
  %88 = vmatprep.subr.mxu0 0.0
  %89 = vmatpush2.msra.mxu0 0.0
  %90 = vmatprep.subr.mxu0 0.0
  %91 = vmatpush2.msra.mxu0 0.0
  %92 = vmatprep.subr.mxu0 0.0
  %93 = vmatpush2.msra.mxu0 0.0
  %94 = vmatprep.subr.mxu0 0.0
  %95 = vmatpush2.msra.mxu0 0.0
  %96 = vmatprep.subr.mxu0 0.0
  %97 = vmatpush2.msra.mxu0 0.0
  %98 = vmatprep.subr.mxu0 0.0
  %99 = vmatpush2.msra.mxu0 0.0
  %100 = vmatprep.subr.mxu0 0.0
  %101 = vmatpush2.msra.mxu0 0.0
  %102 = vmatprep.subr.mxu0 0.0
  %103 = vmatpush2.msra.mxu0 0.0
  %104 = vmatprep.subr.mxu0 0.0
  %105 = vmatpush2.msra.mxu0 0.0
  %106 = vmatprep.subr.mxu0 0.0
  %107 = vmatpush2.msra.mxu0 0.0
  %108 = vmatprep.subr.mxu0 0.0
  %109 = vmatpush2.msra.mxu0 0.0
  %110 = vmatprep.subr.mxu0 0.0
  %111 = vmatpush2.msra.mxu0 0.0
  %112 = vmatprep.subr.mxu0 0.0
  %113 = vmatpush2.msra.mxu0 0.0
  %114 = vmatprep.subr.mxu0 0.0
  %115 = vmatpush2.msra.mxu0 0.0
  %116 = vmatprep.mubr.f32.mxu0 0.0
  %117 = vmatmul.mubr.f32.gmra.mxu0 %v34
  %v118 = vpop.f32.mrf.mxu0
  %v119 = vadd.f32 0.0, %v118
  %v120 = vpop.f32.mrf.mxu0
  %121 = vmatprep.mubr.f32.mxu0 0.0
  %122 = vmatmul.mubr.f32.gmra.mxu0 %v35
  %v123 = vpop.f32.mrf.mxu0
  %v124 = vadd.f32 0.0, %v123
  %v125 = vpop.f32.mrf.mxu0
  %126 = vdwg.mxu0
  %v127 = vrsqrt.pop %v119
  %v128 = vmul.f32 %v119, %v127
  %vm129 = vcmp.eq.f32.partialorder %v119, inf
  %v130 = vsel %vm129, %v119, %v128
  %vm131 = vcmp.eq.f32.partialorder %v119, 0.0
  %v132 = vand.u32 %v119, 2147483648
  %v133 = vsel %vm131, %v132, %v130
  %v134 = vrsqrt.pop %v124
  %v135 = vmul.f32 %v124, %v134
  %vm136 = vcmp.eq.f32.partialorder %v124, inf
  %v137 = vsel %vm136, %v124, %v135
  %vm138 = vcmp.eq.f32.partialorder %v124, 0.0
  %v139 = vand.u32 %v124, 2147483648
  %v140 = vsel %vm138, %v139, %v137
  %v141 = vsub.f32 2.0, %v133
  %v142 = vsub.f32 2.0, %v140
  %v143 = vmax.f32 %v141, 0.0
  %v144 = vmax.f32 %v142, 0.0
  %v145 = vmul.f32 %v143, %v143
  %v146 = vmul.f32 %v144, %v144
  %v147 = vsub.f32 %v145, %v119
  %v148 = vsub.f32 %v146, %v124
  %v149 = vmul.f32 %v28, %v147
  %v150 = vmul.f32 %v29, %v148
  %v151 = vadd.f32 %v119, %v149
  %v152 = vadd.f32 %v124, %v150
  %p153 = scmp.lt.s32.totalorder 0, 0
  // Predicated region
  $region22: #{tpu_custom_call.1} parent=0 // pred_check
    %p154 = pneg %p153
  $region23: #{tpu_custom_call.1} parent=0 // pred_check_branch
    %156 = sbr.rel (%p154) target = $region25
  $region24: #{tpu_custom_call.1} parent=0 // pred_region
    %v157 = vld [vmem:[%s4] sm:$0xff]
    %v158 = vld [vmem:[%s4 + $0x8] sm:$0xff]
    %v159 = vadd.f32 %v157, %v151
    %v160 = vadd.f32 %v158, %v152
    %vm161 = vcmask 31744
    %162 = vst.msk [vmem:[%s4] sm:$0xff] %vm161, %v159
    %163 = vst.msk [vmem:[%s4 + $0x8] sm:$0xff] %vm161, %v160
  $region25: #{tpu_custom_call.1} parent=0 // pred_fallthru
    _
  // Predicated region
  $region26: #{tpu_custom_call.1} parent=0 // pred_check
    %p164 = pneg %p17
  $region27: #{tpu_custom_call.1} parent=0 // pred_check_branch
    %166 = sbr.rel (%p164) target = $region29
  $region28: #{tpu_custom_call.1} parent=0 // pred_region
    %s167 = smul.u32 0, 64
    %v168 = vlaneseq
    %v169 = vshrl.u32 %v168, 7
    %v170 = vadd.s32 %v169, 8
    %v171 = vmul.u32 %v169, 4
    %v172 = vmul.u32 %v170, 4
    %v173 = vstv %s167
    %v174 = vadd.s32 %v173, %v171
    %v175 = vadd.s32 %v173, %v172
    %v176 = vlaneseq
    %v177 = vand.u32 %v176, 127
    %v178 = vadd.s32 %v174, %v177
    %v179 = vadd.s32 %v175, %v177
    %v180 = vld [vmem:[%s4] sm:$0xff]
    %v181 = vld [vmem:[%s4 + $0x8] sm:$0xff]
    %vm182 = vcmp.lt.s32.totalorder %v178, 50
    %vm183 = vcmp.lt.s32.totalorder %v179, 50
    %v184 = vsel %vm182, %v151, 0.0
    %v185 = vsel %vm183, %v152, 0.0
    %v186 = vadd.f32 %v180, %v184
    %v187 = vadd.f32 %v181, %v185
    %vm188 = vcmask 31744
    %189 = vst.msk [vmem:[%s4] sm:$0xff] %vm188, %v186
    %190 = vst.msk [vmem:[%s4 + $0x8] sm:$0xff] %vm188, %v187
  $region29: #{tpu_custom_call.1} parent=0 // pred_fallthru
    _
  // Predicated region
  $region30: #{tpu_custom_call.1} parent=0 // pred_check
    _
  $region31: #{tpu_custom_call.1} parent=0 // pred_check_branch
    %192 = sbr.rel (0) target = $region33
  $region32: #{tpu_custom_call.1} parent=0 // pred_region
    _
  $region33: #{tpu_custom_call.1} parent=0 // pred_fallthru
    _
  // Predicated region
  $region34: #{tpu_custom_call.1} parent=0 // pred_check
    _
  $region35: #{tpu_custom_call.1} parent=0 // pred_check_branch
    %194 = sbr.rel (0) target = $region37
  $region36: #{tpu_custom_call.1} parent=0 // pred_region
    _
  $region37: #{tpu_custom_call.1} parent=0 // pred_fallthru
    _

</llo_original>
